<compile_context>
chip_gen: v7x
topology: tpu7x:2x2x1
jax: 0.10.0
libtpu: 0.0.40
codegen_flags: <defaults>
</compile_context>

<pallas_src>
import functools
import math

import jax
import jax.numpy as jnp
from jax.experimental import pallas as pl
from jax.experimental.pallas import tpu as pltpu


def _round_up(x, m):
    return (x + m - 1) // m * m


# ----------------------------------------------------------------------------
# Pallas kernel: 3-layer feature extractor + fused (action|selection) head
# grid = (batch_tiles, k_tiles) ; k streams the ff_d reduction of layer 2.
# ----------------------------------------------------------------------------
def policy_kernel(state_ref,
                  w1_ref, b1_ref,
                  w2_ref, b2_ref,
                  w3_ref, b3_ref,
                  wh_ref, bh_ref,
                  out_ref,
                  acc_ref,
                  *, num_action_cols):
    """out[:, :2*NA]        = softmax(feats @ Wa + ba)
       out[:, 2*NA:2*NA+SS] = feats @ Ws + bs           (raw selection logits)
       out[:, rest]         = 0                         (lane padding)
    """
    neg_slope = jnp.float32(0.01)  # torch.nn.LeakyReLU default
    k = pl.program_id(1)
    nk = pl.num_programs(1)

    @pl.when(k == 0)
    def _():
        acc_ref[...] = jnp.zeros_like(acc_ref)

    # Layer 1 (positional encoding already folded into W1_eff): compute only
    # the ff_d column-slice belonging to this k step, apply LeakyReLU, and
    # accumulate its contribution to layer 2's output.  bf16 x bf16 on the
    # MXU, f32 accumulate.
    x = state_ref[...].astype(jnp.bfloat16)
    h1 = jnp.dot(x, w1_ref[...], preferred_element_type=jnp.float32) + b1_ref[...]
    h1 = jnp.where(h1 > 0, h1, neg_slope * h1)
    acc_ref[...] += jnp.dot(h1.astype(jnp.bfloat16), w2_ref[...],
                            preferred_element_type=jnp.float32)

    # Finalize: bias + LeakyReLU on layer 2, layer 3, fused head, softmax.
    @pl.when(k == nk - 1)
    def _():
        h2 = acc_ref[...] + b2_ref[...]
        h2 = jnp.where(h2 > 0, h2, neg_slope * h2)

        feats = jnp.dot(h2.astype(jnp.bfloat16), w3_ref[...],
                        preferred_element_type=jnp.float32) + b3_ref[...]

        # Fused action + selection heads: one matmul, lane-dense (padded to 128).
        head = jnp.dot(feats.astype(jnp.bfloat16), wh_ref[...],
                       preferred_element_type=jnp.float32) + bh_ref[...]

        # Softmax over the first `num_action_cols` columns only; full-vreg
        # elementwise work, no narrow slices or masked partial stores.
        col = jax.lax.broadcasted_iota(jnp.int32, head.shape, 1)
        is_action = col < num_action_cols
        masked = jnp.where(is_action, head, -jnp.inf)
        m = jnp.max(masked, axis=-1, keepdims=True)
        e = jnp.exp(masked - m)                      # non-action cols -> 0
        denom = jnp.sum(e, axis=-1, keepdims=True)
        probs = e / denom                            # exact divide: rows sum to 1

        # Single lane-dense store: action probs | selection logits | zero pad.
        out_ref[...] = jnp.where(is_action, probs, head)


# ----------------------------------------------------------------------------
# Parameter container / wrapper
# ----------------------------------------------------------------------------
class EnhancedMLPForwardPolicyPallas:
    def __init__(self, state_dim, hidden_dim, num_actions, batch_size,
                 embedding_dim=64, ep_len=3, use_selection=True, key=None):
        self.state_dim = state_dim
        self.hidden_dim = hidden_dim
        self.num_actions = num_actions
        self.batch_size = batch_size
        self.embedding_dim = embedding_dim
        self.use_selection = use_selection
        self.episode_length = ep_len + 1

        S = state_dim
        f_d = S * S * embedding_dim
        ff_d = embedding_dim * hidden_dim
        dims = [f_d, ff_d, ff_d // 4, hidden_dim]
        self.dims = dims

        if key is None:
            key = jax.random.PRNGKey(0)

        def linear_init(k, fan_in, fan_out):
            # PyTorch nn.Linear default: U(-1/sqrt(fan_in), 1/sqrt(fan_in))
            kw, kb = jax.random.split(k)
            bound = 1.0 / math.sqrt(fan_in)
            w = jax.random.uniform(kw, (fan_in, fan_out), jnp.float32, -bound, bound)
            b = jax.random.uniform(kb, (1, fan_out), jnp.float32, -bound, bound)
            return w, b

        keys = jax.random.split(key, 5)
        w1_full, b1 = linear_init(keys[0], dims[0], dims[1])
        w2, b2 = linear_init(keys[1], dims[1], dims[2])
        w3, b3 = linear_init(keys[2], dims[2], dims[3])
        wa, ba = linear_init(keys[3], hidden_dim, num_actions * 2)
        ws, bs = linear_init(keys[4], hidden_dim, S * S)

        self.positional_encoding = self._create_positional_encoding(S, embedding_dim)

        # Fold the positional encoding into layer-1 weights (exact rewrite of
        # ((state[...,None]*pe).reshape(B,-1) @ W1) since pe is fixed):
        #   W1_eff[i, j] = sum_e pe_flat[i, e] * W1[(i*E + e), j]
        pe_flat = self.positional_encoding.reshape(S * S, embedding_dim)
        w1_eff = jnp.einsum('ie,iej->ij', pe_flat,
                            w1_full.reshape(S * S, embedding_dim, dims[1]))

        # bf16 weights (halved HBM->VMEM traffic), f32 biases.
        self.w1 = w1_eff.astype(jnp.bfloat16)          # (S*S, ff_d)
        self.b1 = b1
        self.w2 = w2.astype(jnp.bfloat16)               # (ff_d, ff_d//4)
        self.b2 = b2
        self.w3 = w3.astype(jnp.bfloat16)               # (ff_d//4, hidden)
        self.b3 = b3

        # Fused (action | selection) head, padded to a multiple of 128 lanes.
        n_head = num_actions * 2 + S * S
        self.n_head = n_head
        self.head_pad = _round_up(n_head, 128)
        wh = jnp.concatenate([wa, ws], axis=1)
        bh = jnp.concatenate([ba, bs], axis=1)
        self.wh = jnp.pad(wh, ((0, 0), (0, self.head_pad - n_head))).astype(jnp.bfloat16)
        self.bh = jnp.pad(bh, ((0, 0), (0, self.head_pad - n_head)))  # f32

    @staticmethod
    def _create_positional_encoding(size, dim):
        pos = jnp.arange(size, dtype=jnp.float32)[:, None]                       # (size, 1)
        div = jnp.exp(jnp.arange(0, dim, 2, dtype=jnp.float32)
                      * (-math.log(10000.0) / dim))                              # (dim/2,)
        sin = jnp.sin(pos * div)                                                 # (size, dim/2)
        cos = jnp.cos(pos * div)
        enc = jnp.zeros((size, size, dim), dtype=jnp.float32)
        enc = enc.at[:, :, 0::2].set(jnp.broadcast_to(sin[None], (size, size, dim // 2)))
        enc = enc.at[:, :, 1::2].set(jnp.broadcast_to(cos[None], (size, size, dim // 2)))
        return enc

    # ------------------------------------------------------------------ tiling
    @staticmethod
    def _pick_k_tile(ff_d):
        """Largest 128-multiple <= 2048 that divides ff_d; else no K tiling."""
        if ff_d <= 2048:
            return ff_d
        for cand in (2048, 1024, 512, 256, 128):
            if ff_d % cand == 0:
                return cand
        return ff_d

    def _vmem_budget_bytes(self, TB, tile_ff):
        SS = self.state_dim * self.state_dim
        ff4, hid, hp = self.dims[2], self.dims[3], self.head_pad
        BF, F32, DB = 2, 4, 2  # bf16, f32, double-buffer factor
        b = 0
        b += DB * TB * SS * F32            # state tile
        b += DB * SS * tile_ff * BF        # W1 slice
        b += DB * tile_ff * F32            # b1 slice
        b += DB * tile_ff * ff4 * BF       # W2 slice
        b += DB * ff4 * F32                # b2
        b += DB * ff4 * hid * BF           # W3
        b += DB * hid * F32                # b3
        b += DB * hid * hp * BF            # Wh
        b += DB * hp * F32                 # bh
        b += DB * TB * hp * F32            # out tile
        b += TB * ff4 * F32                # acc scratch
        b += 2 * TB * tile_ff * F32        # h1 / cast intermediates headroom
        b = int(b * 1.5) + (4 << 20)
        # floor 32 MiB (well above any default scoped limit), cap 48 MiB so it
        # stays comfortably inside v7x's 64 MiB physical VMEM.
        return min(max(b, 32 << 20), 48 << 20)

    # ------------------------------------------------------------------ kernel
    def _run_kernel(self, state_flat):
        Bp = state_flat.shape[0]
        SS = self.state_dim * self.state_dim
        ff_d, ff4, hid = self.dims[1], self.dims[2], self.dims[3]
        hp = self.head_pad

        TB = Bp if Bp <= 128 else 128          # batch tile (Bp is a multiple of TB)
        tile_ff = self._pick_k_tile(ff_d)      # layer-2 reduction tile
        grid = (Bp // TB, ff_d // tile_ff)

        in_specs = [
            pl.BlockSpec((TB, SS),       lambda b, k: (b, 0)),   # state
            pl.BlockSpec((SS, tile_ff),  lambda b, k: (0, k)),   # W1 slice
            pl.BlockSpec((1, tile_ff),   lambda b, k: (0, k)),   # b1 slice
            pl.BlockSpec((tile_ff, ff4), lambda b, k: (k, 0)),   # W2 slice
            pl.BlockSpec((1, ff4),       lambda b, k: (0, 0)),   # b2
            pl.BlockSpec((ff4, hid),     lambda b, k: (0, 0)),   # W3
            pl.BlockSpec((1, hid),       lambda b, k: (0, 0)),   # b3
            pl.BlockSpec((hid, hp),      lambda b, k: (0, 0)),   # Wh (fused head)
            pl.BlockSpec((1, hp),        lambda b, k: (0, 0)),   # bh
        ]
        out_specs = pl.BlockSpec((TB, hp), lambda b, k: (b, 0))

        flops = 2 * Bp * (SS * ff_d + ff_d * ff4 + ff4 * hid + hid * hp)
        weight_bytes = 2 * (self.w1.size + self.w2.size + self.w3.size + self.wh.size)
        bias_bytes = 4 * (self.b1.size + self.b2.size + self.b3.size + self.bh.size)
        io_bytes = 4 * (Bp * SS + Bp * hp)
        cost = pl.CostEstimate(
            flops=int(flops),
            transcendentals=int(Bp * hp),
            bytes_accessed=int(weight_bytes + bias_bytes + io_bytes),
        )

        kern = functools.partial(policy_kernel,
                                 num_action_cols=self.num_actions * 2)
        return pl.pallas_call(
            kern,
            out_shape=jax.ShapeDtypeStruct((Bp, hp), jnp.float32),
            grid=grid,
            in_specs=in_specs,
            out_specs=out_specs,
            scratch_shapes=[pltpu.VMEM((TB, ff4), jnp.float32)],
            compiler_params=pltpu.CompilerParams(
                dimension_semantics=("parallel", "arbitrary"),
                vmem_limit_bytes=self._vmem_budget_bytes(TB, tile_ff)),
            cost_estimate=cost,
        )(state_flat,
          self.w1, self.b1,
          self.w2, self.b2,
          self.w3, self.b3,
          self.wh, self.bh)

    # ----------------------------------------------------------------- forward
    def forward(self, state, mask=None, key=None):
        B = state.shape[0]
        S = self.state_dim
        state_flat = state.reshape(B, S * S).astype(jnp.float32)

        # Pad batch rows to a multiple of 16 (bf16 vreg packing is (16,128));
        # when the batch exceeds one 128-row tile, pad to a multiple of 128 so
        # the batch grid divides evenly.
        Bp = _round_up(B, 16)
        if Bp > 128:
            Bp = _round_up(Bp, 128)
        if Bp != B:
            state_flat = jnp.pad(state_flat, ((0, Bp - B), (0, 0)))

        out = self._run_kernel(state_flat)[:B]   # padded rows never reach select_mask
        na2 = self.num_actions * 2
        action_probs = out[:, :na2]
        selection_logits = out[:, na2:na2 + S * S]

        if self.use_selection:
            coordinate = self.select_mask(selection_logits, mask, key)
            return action_probs, coordinate
        return action_probs, mask

    # -------------------------------------------------------------- select_mask
    def select_mask(self, x_selection, mask, key):
        # TODO(synk): torch.distributions.Categorical sampling is stochastic and cannot be
        # reproduced bit-for-bit; this mirrors its semantics (sample proportional to the
        # non-negative unmasked selection values, uniform fallback over the free cells
        # when they are all zero) with ONE batched jax.random.categorical call.
        B = x_selection.shape[0]
        S = self.state_dim
        if key is None:
            key = jax.random.PRNGKey(1)

        valid = ~mask.reshape(B, -1)                                    # True = free cell
        probs = jnp.where(valid, jnp.maximum(x_selection, 0.0), 0.0)    # Categorical needs >= 0
        all_zero = jnp.all(probs == 0.0, axis=-1, keepdims=True)
        probs = jnp.where(all_zero, valid.astype(jnp.float32), probs)   # uniform fallback
        logp = jnp.where(probs > 0,
                         jnp.log(jnp.maximum(probs, 1e-30)),
                         -jnp.inf)
        idx = jax.random.categorical(key, logp, axis=-1)                # (B,)
        return jnp.stack([idx // S, idx % S], axis=-1)                  # (B, 2)


# ----------------------------------------------------------------------------
# Demo
# ----------------------------------------------------------------------------
if __name__ == "__main__":
    # small shapes consistent with the module
    state_dim = 4
    hidden_dim = 32
    num_actions = 4
    batch_size = 2
    embedding_dim = 16

    root = jax.random.PRNGKey(0)
    k_params, k_state, k_mask, k_sample = jax.random.split(root, 4)

    policy = EnhancedMLPForwardPolicyPallas(
        state_dim=state_dim, hidden_dim=hidden_dim, num_actions=num_actions,
        batch_size=batch_size, embedding_dim=embedding_dim, ep_len=3,
        use_selection=True, key=k_params)

    state = jax.random.normal(k_state, (batch_size, state_dim, state_dim), jnp.float32)

    # boolean mask (True = already occupied); guarantee at least one free cell per row
    mask = jax.random.bernoulli(k_mask, 0.3, (batch_size, state_dim, state_dim))
    mask = mask.at[:, 0, 0].set(False)

    action_probs, coordinate = policy.forward(state, mask, key=k_sample)
    action_probs = jax.block_until_ready(action_probs)
    coordinate = jax.block_until_ready(coordinate)

    assert action_probs.shape == (batch_size, num_actions * 2)
    assert coordinate.shape == (batch_size, 2)
    # exact softmax divide -> rows sum to 1 to f32 precision
    assert bool(jnp.allclose(jnp.sum(action_probs, axis=-1), 1.0, atol=1e-5))
    assert bool(jnp.all(action_probs >= 0.0))
    # sampled coordinates must land on free cells
    assert bool(jnp.all(~mask[jnp.arange(batch_size), coordinate[:, 0], coordinate[:, 1]]))

    print("KERNEL_OK")
</pallas_src>

<mosaic_0001>
module attributes {stable_mosaic.version = 11 : i64} {
  func.func @policy_kernel(%arg0: i32, %arg1: i32, %arg2: memref<16x16xf32, #tpu.memory_space<vmem>>, %arg3: memref<16x512xbf16, #tpu.memory_space<vmem>>, %arg4: memref<1x512xf32, #tpu.memory_space<vmem>>, %arg5: memref<512x128xbf16, #tpu.memory_space<vmem>>, %arg6: memref<1x128xf32, #tpu.memory_space<vmem>>, %arg7: memref<128x32xbf16, #tpu.memory_space<vmem>>, %arg8: memref<1x32xf32, #tpu.memory_space<vmem>>, %arg9: memref<32x128xbf16, #tpu.memory_space<vmem>>, %arg10: memref<1x128xf32, #tpu.memory_space<vmem>>, %arg11: memref<16x128xf32, #tpu.memory_space<vmem>>, %arg12: memref<16x128xf32, #tpu.memory_space<vmem>>) attributes {dimension_semantics = [#tpu.dimension_semantics<parallel>, #tpu.dimension_semantics<arbitrary>], iteration_bounds = array<i64: 1, 1>, scalar_prefetch = 0 : i64, scratch_operands = 1 : i64, tpu.core_type = #tpu.core_type<tc>, window_params = [{transform_indices = @transform_0, window_bounds = array<i64: 16, 16>}, {transform_indices = @transform_1, window_bounds = array<i64: 16, 512>}, {transform_indices = @transform_2, window_bounds = array<i64: 1, 512>}, {transform_indices = @transform_3, window_bounds = array<i64: 512, 128>}, {pipeline_mode = #tpu.pipeline_mode<synchronous>, transform_indices = @transform_4, window_bounds = array<i64: 1, 128>}, {pipeline_mode = #tpu.pipeline_mode<synchronous>, transform_indices = @transform_5, window_bounds = array<i64: 128, 32>}, {pipeline_mode = #tpu.pipeline_mode<synchronous>, transform_indices = @transform_6, window_bounds = array<i64: 1, 32>}, {pipeline_mode = #tpu.pipeline_mode<synchronous>, transform_indices = @transform_7, window_bounds = array<i64: 32, 128>}, {pipeline_mode = #tpu.pipeline_mode<synchronous>, transform_indices = @transform_8, window_bounds = array<i64: 1, 128>}, {transform_indices = @transform_9, window_bounds = array<i64: 16, 128>}]} {
    %c0_i32 = arith.constant 0 : i32
    %0 = arith.cmpi eq, %arg1, %c0_i32 : i32
    %1 = arith.extui %0 : i1 to i32
    %c0_i32_0 = arith.constant 0 : i32
    %2 = arith.cmpi ne, %1, %c0_i32_0 : i32
    scf.if %2 {
      %cst_18 = arith.constant 0.000000e+00 : f32
      %24 = vector.broadcast %cst_18 : f32 to vector<16x128xf32>
      %c0_19 = arith.constant 0 : index
      %c0_20 = arith.constant 0 : index
      %25 = vector.load %arg12[%c0_19, %c0_20] : memref<16x128xf32, #tpu.memory_space<vmem>>, vector<16x128xf32>
      tpu.vector_store %arg12[%c0_19, %c0_20], %24 {strides = array<i32>} : memref<16x128xf32, #tpu.memory_space<vmem>>, vector<16x128xf32>,
    } else {
    }
    %c0 = arith.constant 0 : index
    %c0_1 = arith.constant 0 : index
    %3 = vector.load %arg2[%c0, %c0_1] : memref<16x16xf32, #tpu.memory_space<vmem>>, vector<16x16xf32>
    %4 = arith.truncf %3 : vector<16x16xf32> to vector<16x16xbf16>
    %c0_2 = arith.constant 0 : index
    %c0_3 = arith.constant 0 : index
    %5 = vector.load %arg3[%c0_2, %c0_3] : memref<16x512xbf16, #tpu.memory_space<vmem>>, vector<16x512xbf16>
    %cst = arith.constant dense<0.000000e+00> : vector<16x512xf32>
    %6 = tpu.matmul %4, %5, %cst {dimension_numbers = #tpu.dot_dimension_numbers<[1], [0], [0], [1], [0, 0, 1, 1], [], []>} : vector<16x16xbf16>, vector<16x512xbf16>, vector<16x512xf32> -> vector<16x512xf32>
    %c0_4 = arith.constant 0 : index
    %c0_5 = arith.constant 0 : index
    %7 = vector.load %arg4[%c0_4, %c0_5] : memref<1x512xf32, #tpu.memory_space<vmem>>, vector<1x512xf32>
    %8 = vector.broadcast %7 : vector<1x512xf32> to vector<16x512xf32>
    %9 = arith.addf %6, %8 : vector<16x512xf32>
    %cst_6 = arith.constant 0.000000e+00 : f32
    %10 = vector.broadcast %cst_6 : f32 to vector<16x512xf32>
    %11 = arith.cmpf ogt, %9, %10 : vector<16x512xf32>
    %cst_7 = arith.constant 0.00999999977 : f32
    %12 = vector.broadcast %cst_7 : f32 to vector<16x512xf32>
    %13 = arith.mulf %12, %9 : vector<16x512xf32>
    %14 = arith.select %11, %9, %13 : vector<16x512xi1>, vector<16x512xf32>
    %c0_8 = arith.constant 0 : index
    %c0_9 = arith.constant 0 : index
    %15 = vector.load %arg12[%c0_8, %c0_9] : memref<16x128xf32, #tpu.memory_space<vmem>>, vector<16x128xf32>
    %16 = arith.truncf %14 : vector<16x512xf32> to vector<16x512xbf16>
    %c0_10 = arith.constant 0 : index
    %c0_11 = arith.constant 0 : index
    %17 = vector.load %arg5[%c0_10, %c0_11] : memref<512x128xbf16, #tpu.memory_space<vmem>>, vector<512x128xbf16>
    %cst_12 = arith.constant dense<0.000000e+00> : vector<16x128xf32>
    %18 = tpu.matmul %16, %17, %cst_12 {dimension_numbers = #tpu.dot_dimension_numbers<[1], [0], [0], [1], [0, 0, 1, 1], [], []>} : vector<16x512xbf16>, vector<512x128xbf16>, vector<16x128xf32> -> vector<16x128xf32>
    %19 = arith.addf %15, %18 : vector<16x128xf32>
    %c0_13 = arith.constant 0 : index
    %c0_14 = arith.constant 0 : index
    %20 = vector.load %arg12[%c0_13, %c0_14] : memref<16x128xf32, #tpu.memory_space<vmem>>, vector<16x128xf32>
    tpu.vector_store %arg12[%c0_13, %c0_14], %19 {strides = array<i32>} : memref<16x128xf32, #tpu.memory_space<vmem>>, vector<16x128xf32>,
    %c0_i32_15 = arith.constant 0 : i32
    %21 = arith.cmpi eq, %arg1, %c0_i32_15 : i32
    %22 = arith.extui %21 : i1 to i32
    %cst_16 = arith.constant 0.00999999977 : f32
    %c0_i32_17 = arith.constant 0 : i32
    %23 = arith.cmpi ne, %22, %c0_i32_17 : i32
    scf.if %23 {
      %c0_18 = arith.constant 0 : index
      %c0_19 = arith.constant 0 : index
      %24 = vector.load %arg12[%c0_18, %c0_19] : memref<16x128xf32, #tpu.memory_space<vmem>>, vector<16x128xf32>
      %c0_20 = arith.constant 0 : index
      %c0_21 = arith.constant 0 : index
      %25 = vector.load %arg6[%c0_20, %c0_21] : memref<1x128xf32, #tpu.memory_space<vmem>>, vector<1x128xf32>
      %26 = vector.broadcast %25 : vector<1x128xf32> to vector<16x128xf32>
      %27 = arith.addf %24, %26 : vector<16x128xf32>
      %cst_22 = arith.constant 0.000000e+00 : f32
      %28 = vector.broadcast %cst_22 : f32 to vector<16x128xf32>
      %29 = arith.cmpf ogt, %27, %28 : vector<16x128xf32>
      %30 = vector.broadcast %cst_16 : f32 to vector<16x128xf32>
      %31 = arith.mulf %30, %27 : vector<16x128xf32>
      %32 = arith.select %29, %27, %31 : vector<16x128xi1>, vector<16x128xf32>
      %33 = arith.truncf %32 : vector<16x128xf32> to vector<16x128xbf16>
      %c0_23 = arith.constant 0 : index
      %c0_24 = arith.constant 0 : index
      %34 = vector.load %arg7[%c0_23, %c0_24] : memref<128x32xbf16, #tpu.memory_space<vmem>>, vector<128x32xbf16>
      %cst_25 = arith.constant dense<0.000000e+00> : vector<16x32xf32>
      %35 = tpu.matmul %33, %34, %cst_25 {dimension_numbers = #tpu.dot_dimension_numbers<[1], [0], [0], [1], [0, 0, 1, 1], [], []>} : vector<16x128xbf16>, vector<128x32xbf16>, vector<16x32xf32> -> vector<16x32xf32>
      %c0_26 = arith.constant 0 : index
      %c0_27 = arith.constant 0 : index
      %36 = vector.load %arg8[%c0_26, %c0_27] : memref<1x32xf32, #tpu.memory_space<vmem>>, vector<1x32xf32>
      %37 = vector.broadcast %36 : vector<1x32xf32> to vector<16x32xf32>
      %38 = arith.addf %35, %37 : vector<16x32xf32>
      %39 = arith.truncf %38 : vector<16x32xf32> to vector<16x32xbf16>
      %c0_28 = arith.constant 0 : index
      %c0_29 = arith.constant 0 : index
      %40 = vector.load %arg9[%c0_28, %c0_29] : memref<32x128xbf16, #tpu.memory_space<vmem>>, vector<32x128xbf16>
      %cst_30 = arith.constant dense<0.000000e+00> : vector<16x128xf32>
      %41 = tpu.matmul %39, %40, %cst_30 {dimension_numbers = #tpu.dot_dimension_numbers<[1], [0], [0], [1], [0, 0, 1, 1], [], []>} : vector<16x32xbf16>, vector<32x128xbf16>, vector<16x128xf32> -> vector<16x128xf32>
      %c0_31 = arith.constant 0 : index
      %c0_32 = arith.constant 0 : index
      %42 = vector.load %arg10[%c0_31, %c0_32] : memref<1x128xf32, #tpu.memory_space<vmem>>, vector<1x128xf32>
      %43 = vector.broadcast %42 : vector<1x128xf32> to vector<16x128xf32>
      %44 = arith.addf %41, %43 : vector<16x128xf32>
      %45 = tpu.iota {dimensions = array<i32: 1>} : vector<16x128xi32>
      %c8_i32 = arith.constant 8 : i32
      %46 = vector.broadcast %c8_i32 : i32 to vector<16x128xi32>
      %47 = arith.cmpi slt, %45, %46 : vector<16x128xi32>
      %cst_33 = arith.constant 0xFF800000 : f32
      %48 = vector.broadcast %cst_33 : f32 to vector<16x128xf32>
      %49 = arith.select %47, %44, %48 : vector<16x128xi1>, vector<16x128xf32>
      %cst_34 = arith.constant dense<0xFF800000> : vector<16xf32>
      %50 = vector.multi_reduction <maximumf>, %49, %cst_34 [1] : vector<16x128xf32> to vector<16xf32>
      %51 = vector.shape_cast %50 : vector<16xf32> to vector<16x1xf32>
      %52 = vector.broadcast %51 : vector<16x1xf32> to vector<16x128xf32>
      %53 = arith.subf %49, %52 : vector<16x128xf32>
      %54 = math.exp %53 : vector<16x128xf32>
      %cst_35 = arith.constant dense<0.000000e+00> : vector<16xf32>
      %55 = vector.multi_reduction <add>, %54, %cst_35 [1] : vector<16x128xf32> to vector<16xf32>
      %56 = vector.shape_cast %55 : vector<16xf32> to vector<16x1xf32>
      %57 = vector.broadcast %56 : vector<16x1xf32> to vector<16x128xf32>
      %58 = arith.divf %54, %57 : vector<16x128xf32>
      %59 = arith.select %47, %58, %44 : vector<16x128xi1>, vector<16x128xf32>
      %c0_36 = arith.constant 0 : index
      %c0_37 = arith.constant 0 : index
      %60 = vector.load %arg11[%c0_36, %c0_37] : memref<16x128xf32, #tpu.memory_space<vmem>>, vector<16x128xf32>
      tpu.vector_store %arg11[%c0_36, %c0_37], %59 {strides = array<i32>} : memref<16x128xf32, #tpu.memory_space<vmem>>, vector<16x128xf32>,
    } else {
    }
    return
  }
  func.func @transform_0(%arg0: i32, %arg1: i32) -> (i32, i32) {
    %c0_i32 = arith.constant 0 : i32
    %c0_i32_0 = arith.constant 0 : i32
    return %arg0, %c0_i32 : i32, i32
  }
  func.func @transform_1(%arg0: i32, %arg1: i32) -> (i32, i32) {
    %c0_i32 = arith.constant 0 : i32
    %c0_i32_0 = arith.constant 0 : i32
    return %c0_i32, %arg1 : i32, i32
  }
  func.func @transform_2(%arg0: i32, %arg1: i32) -> (i32, i32) {
    %c0_i32 = arith.constant 0 : i32
    %c0_i32_0 = arith.constant 0 : i32
    return %c0_i32, %arg1 : i32, i32
  }
  func.func @transform_3(%arg0: i32, %arg1: i32) -> (i32, i32) {
    %c0_i32 = arith.constant 0 : i32
    %c0_i32_0 = arith.constant 0 : i32
    return %arg1, %c0_i32 : i32, i32
  }
  func.func @transform_4(%arg0: i32, %arg1: i32) -> (i32, i32) {
    %c0_i32 = arith.constant 0 : i32
    %c0_i32_0 = arith.constant 0 : i32
    %c0_i32_1 = arith.constant 0 : i32
    return %c0_i32, %c0_i32_0 : i32, i32
  }
  func.func @transform_5(%arg0: i32, %arg1: i32) -> (i32, i32) {
    %c0_i32 = arith.constant 0 : i32
    %c0_i32_0 = arith.constant 0 : i32
    %c0_i32_1 = arith.constant 0 : i32
    return %c0_i32, %c0_i32_0 : i32, i32
  }
  func.func @transform_6(%arg0: i32, %arg1: i32) -> (i32, i32) {
    %c0_i32 = arith.constant 0 : i32
    %c0_i32_0 = arith.constant 0 : i32
    %c0_i32_1 = arith.constant 0 : i32
    return %c0_i32, %c0_i32_0 : i32, i32
  }
  func.func @transform_7(%arg0: i32, %arg1: i32) -> (i32, i32) {
    %c0_i32 = arith.constant 0 : i32
    %c0_i32_0 = arith.constant 0 : i32
    %c0_i32_1 = arith.constant 0 : i32
    return %c0_i32, %c0_i32_0 : i32, i32
  }
  func.func @transform_8(%arg0: i32, %arg1: i32) -> (i32, i32) {
    %c0_i32 = arith.constant 0 : i32
    %c0_i32_0 = arith.constant 0 : i32
    %c0_i32_1 = arith.constant 0 : i32
    return %c0_i32, %c0_i32_0 : i32, i32
  }
  func.func @transform_9(%arg0: i32, %arg1: i32) -> (i32, i32) {
    %c0_i32 = arith.constant 0 : i32
    %c0_i32_0 = arith.constant 0 : i32
    return %arg0, %c0_i32 : i32, i32
  }
}

</mosaic_0001>

<llo_original>
// kernel: tpu_custom_call.1
$region0: #{tpu_custom_call.1}
  #allocation0 [shape = 'u32[]', space=smem, size = 0x4, offset = 0x4, fixed_abs, tag = 'smem constant byte address 0x4 - core index']
  #allocation1 [shape = 'u32[144,128]{1,0:T(1,128)}', space=vmem, size = 0x12000, scoped, tag = 'internal scratch']
  #allocation2 [shape = 'f32[16,128]{1,0:T(8,128)}', space=vmem, size = 0x2000, scoped, tag = 'scratch operand']
  %s0 = inlined_call_operand.vmem [shape: f32[16,16], index: 0, kind: input, shape index: {}]
  %s1 = inlined_call_operand.vmem [shape: bf16[16,512], index: 1, kind: input, shape index: {}]
  %s2 = inlined_call_operand.vmem [shape: f32[1,512], index: 2, kind: input, shape index: {}]
  %s3 = inlined_call_operand.hbm [shape: bf16[512,128], index: 3, kind: input, shape index: {}]
  %s4 = inlined_call_operand.vmem [shape: f32[1,128], index: 4, kind: input, shape index: {}]
  %s5 = inlined_call_operand.vmem [shape: bf16[128,32], index: 5, kind: input, shape index: {}]
  %s6 = inlined_call_operand.vmem [shape: f32[1,32], index: 6, kind: input, shape index: {}]
  %s7 = inlined_call_operand.vmem [shape: bf16[32,128], index: 7, kind: input, shape index: {}]
  %s8 = inlined_call_operand.vmem [shape: f32[1,128], index: 8, kind: input, shape index: {}]
  %s9 = inlined_call_operand.hbm [shape: f32[16,128], index: 9, kind: output, shape index: {}]
  %s10 = sld [smem:[#allocation0]]
  $region58: #{tpu_custom_call.1} parent=0
    _
  %s12 = ssub.s32 1, %s10
  %s13 = scalar_select 0, %s12, %s10
  $region1: #{tpu_custom_call.1} parent=0
    #allocation3 [shape = 'u8[131072]{0}', space=vmem, size = 0x20000, scoped, tag = 'input window, operand 3, single buffered']
    #allocation4 [shape = 's32[1]{0}', space=sflag, size = 0x4, scoped, tag = 'scoped memory for tpu_custom_call.1']
    #allocation5 [shape = 's32[1]{0}', space=sflag, size = 0x4, scoped, tag = 'scoped memory for tpu_custom_call.1']
    #allocation6 [shape = 'u8[8192]{0}', space=vmem, size = 0x2000, scoped, tag = 'output window, operand 0, single buffered']
    %14 = vsyncpa [#allocation4], 0
    %15 = vsyncpa [#allocation5], 0
    // Predicated region
    $region2: #{tpu_custom_call.1} parent=1 // pred_check
      _
    $region3: #{tpu_custom_call.1} parent=1 // pred_check_branch
      %17 = sbr.rel (0) target = $region5
    $region4: #{tpu_custom_call.1} parent=1 // pred_region
      _
    $region5: #{tpu_custom_call.1} parent=1 // pred_fallthru
      _
    // Predicated region
    $region6: #{tpu_custom_call.1} parent=1 // pred_check
      _
    $region7: #{tpu_custom_call.1} parent=1 // pred_check_branch
      %19 = sbr.rel (0) target = $region9
    $region8: #{tpu_custom_call.1} parent=1 // pred_region
      _
    $region9: #{tpu_custom_call.1} parent=1 // pred_fallthru
      _
    // Predicated region
    $region10: #{tpu_custom_call.1} parent=1 // pred_check
      _
    $region11: #{tpu_custom_call.1} parent=1 // pred_check_branch
      %21 = sbr.rel (0) target = $region13
    $region12: #{tpu_custom_call.1} parent=1 // pred_region
      _
    $region13: #{tpu_custom_call.1} parent=1 // pred_fallthru
      _
    // Predicated region
    $region14: #{tpu_custom_call.1} parent=1 // pred_check
      _
    $region15: #{tpu_custom_call.1} parent=1 // pred_check_branch
      %23 = sbr.rel (0) target = $region17
    $region16: #{tpu_custom_call.1} parent=1 // pred_region
      %s25 = ssub.s32 4096, 4096
      %26 = vsyncadd [#allocation4], %s25
      %s27 = sshll.u32 [#allocation3], 4
      %s28 = int_to_ptr.vmem [resolvable:$true] %s27
      %33 = dma.hbm_to_vmem [thread:$0]  %s3, 4096, %s28, [#allocation4], 64, 64, 4
    $region17: #{tpu_custom_call.1} parent=1 // pred_fallthru
      _
    // Predicated region
    $region18: #{tpu_custom_call.1} parent=1 // pred_check
      _
    $region19: #{tpu_custom_call.1} parent=1 // pred_check_branch
      %35 = sbr.rel (0) target = $region21
    $region20: #{tpu_custom_call.1} parent=1 // pred_region
      _
    $region21: #{tpu_custom_call.1} parent=1 // pred_fallthru
      _
    // Predicated region
    $region22: #{tpu_custom_call.1} parent=1 // pred_check
      _
    $region23: #{tpu_custom_call.1} parent=1 // pred_check_branch
      %37 = sbr.rel (0) target = $region25
    $region24: #{tpu_custom_call.1} parent=1 // pred_region
      _
    $region25: #{tpu_custom_call.1} parent=1 // pred_fallthru
      _
    // Predicated region
    $region26: #{tpu_custom_call.1} parent=1 // pred_check
      _
    $region27: #{tpu_custom_call.1} parent=1 // pred_check_branch
      %39 = sbr.rel (0) target = $region29
    $region28: #{tpu_custom_call.1} parent=1 // pred_region
      _
    $region29: #{tpu_custom_call.1} parent=1 // pred_fallthru
      _
    // Predicated region
    $region30: #{tpu_custom_call.1} parent=1 // pred_check
      _
    $region31: #{tpu_custom_call.1} parent=1 // pred_check_branch
      %41 = sbr.rel (0) target = $region33
    $region32: #{tpu_custom_call.1} parent=1 // pred_region
      _
    $region33: #{tpu_custom_call.1} parent=1 // pred_fallthru
      _
    // Predicated region
    $region34: #{tpu_custom_call.1} parent=1 // pred_check
      _
    $region35: #{tpu_custom_call.1} parent=1 // pred_check_branch
      %43 = sbr.rel (0) target = $region37
    $region36: #{tpu_custom_call.1} parent=1 // pred_region
      _
    $region37: #{tpu_custom_call.1} parent=1 // pred_fallthru
      _
    // Predicated region
    $region38: #{tpu_custom_call.1} parent=1 // pred_check
      _
    $region39: #{tpu_custom_call.1} parent=1 // pred_check_branch
      %45 = sbr.rel (0) target = $region41
    $region40: #{tpu_custom_call.1} parent=1 // pred_region
      %46 = dma.done [#allocation4], 4096
    $region41: #{tpu_custom_call.1} parent=1 // pred_fallthru
      _
    %p48 = scmp.eq.s32.totalorder 0, 0
    // Predicated region
    $region42: #{tpu_custom_call.1} parent=1 // pred_check
      %p49 = pneg %p48
    $region43: #{tpu_custom_call.1} parent=1 // pred_check_branch
      %51 = sbr.rel (%p49) target = $region45
    $region44: #{tpu_custom_call.1} parent=1 // pred_region
      %52 = vst [vmem:[#allocation2] sm:$0xff] 0.0
      %53 = vst [vmem:[#allocation2 + $0x8] sm:$0xff] 0.0
    $region45: #{tpu_custom_call.1} parent=1 // pred_fallthru
      _
    %v54 = vld [vmem:[%s0] sm:$0xff]
    %v55 = vld [vmem:[%s0 + $0x8] sm:$0xff]
    %v56 = vpack.c.bf16 %v55, %v54
    %v57 = vld [vmem:[%s1] sm:$0xff]
    %v58 = vld [vmem:[%s1 + $0x8] sm:$0xff]
    %v59 = vld [vmem:[%s1 + $0x10] sm:$0xff]
    %v60 = vld [vmem:[%s1 + $0x18] sm:$0xff]
    %v61 = vld [vmem:[%s2] sm:$0xf]
    %v63 = vlaneseq
    %v64 = vshrl.u32 %v63, 7
    %v65 = vsub.s32 0, %v64
    %v66 = vrot.slane %v61, %v65
    %v67 = vlaneseq
    %v68 = vshrl.u32 %v67, 7
    %v69 = vsub.s32 1, %v68
    %v70 = vrot.slane %v61, %v69
    %v71 = vlaneseq
    %v72 = vshrl.u32 %v71, 7
    %v73 = vsub.s32 2, %v72
    %v74 = vrot.slane %v61, %v73
    %v75 = vlaneseq
    %v76 = vshrl.u32 %v75, 7
    %v77 = vsub.s32 3, %v76
    %v78 = vrot.slane %v61, %v77
    %v87 = vunpack.c.l.b16 %v57
    %v88 = vunpack.c.h.b16 %v57
    %v89 = vunpack.c.l.b16 %v58
    %v90 = vunpack.c.h.b16 %v58
    %v91 = vunpack.c.l.b16 %v59
    %v92 = vunpack.c.h.b16 %v59
    %v93 = vunpack.c.l.b16 %v60
    %v94 = vunpack.c.h.b16 %v60
    %v95 = vpack.c.b16 %v91, %v87
    %v96 = vpack.c.b16 %v92, %v88
    %v97 = vpack.c.b16 %v93, %v89
    %v98 = vpack.c.b16 %v94, %v90
    %vm103 = vcmask 130048
    %v105 = vsel %vm103, %v56, 0
    %107 = vmatprep.subr.bf16.mxu0 %v96
    %108 = vmatpush1.bf16.msra.mxu0 %v95
    %109 = vmatprep.subr.bf16.mxu0 0
    %110 = vmatpush1.bf16.msra.mxu0 0
    %111 = vmatprep.subr.bf16.mxu0 0
    %112 = vmatpush1.bf16.msra.mxu0 0
    %113 = vmatprep.subr.bf16.mxu0 0
    %114 = vmatpush1.bf16.msra.mxu0 0
    %115 = vmatprep.subr.bf16.mxu0 0
    %116 = vmatpush1.bf16.msra.mxu0 0
    %117 = vmatprep.subr.bf16.mxu0 0
    %118 = vmatpush1.bf16.msra.mxu0 0
    %119 = vmatprep.subr.bf16.mxu0 0
    %120 = vmatpush1.bf16.msra.mxu0 0
    %121 = vmatprep.subr.bf16.mxu0 0
    %122 = vmatpush1.bf16.msra.mxu0 0
    %123 = vmatprep.subr.bf16.mxu0 0
    %124 = vmatpush1.bf16.msra.mxu0 0
    %125 = vmatprep.subr.bf16.mxu0 0
    %126 = vmatpush1.bf16.msra.mxu0 0
    %127 = vmatprep.subr.bf16.mxu0 0
    %128 = vmatpush1.bf16.msra.mxu0 0
    %129 = vmatprep.subr.bf16.mxu0 0
    %130 = vmatpush1.bf16.msra.mxu0 0
    %131 = vmatprep.subr.bf16.mxu0 0
    %132 = vmatpush1.bf16.msra.mxu0 0
    %133 = vmatprep.subr.bf16.mxu0 0
    %134 = vmatpush1.bf16.msra.mxu0 0
    %135 = vmatprep.subr.bf16.mxu0 0
    %136 = vmatpush1.bf16.msra.mxu0 0
    %137 = vmatprep.subr.bf16.mxu0 0
    %138 = vmatpush1.bf16.msra.mxu0 0
    %139 = vmatprep.mubr.bf16.mxu0 0
    %140 = vmatmul.mubr.bf16.gmra.mrb[0].mxu0 %v105
    %v141 = vpop.f32.mrb[0].mxu0
    %v142 = vadd.f32 %v66, %v141
    %v143 = vpop.f32.mrb[0].mxu0
    %v144 = vadd.f32 %v70, %v143
    %v145 = vpop.f32.mrb[0].mxu0
    %v146 = vadd.f32 %v66, %v145
    %v147 = vpop.f32.mrb[0].mxu0
    %v148 = vadd.f32 %v70, %v147
    %149 = vdwg.mxu0
    %150 = vmatprep.subr.bf16.mxu0 %v98
    %151 = vmatpush1.bf16.msra.mxu0 %v97
    %152 = vmatprep.subr.bf16.mxu0 0
    %153 = vmatpush1.bf16.msra.mxu0 0
    %154 = vmatprep.subr.bf16.mxu0 0
    %155 = vmatpush1.bf16.msra.mxu0 0
    %156 = vmatprep.subr.bf16.mxu0 0
    %157 = vmatpush1.bf16.msra.mxu0 0
    %158 = vmatprep.subr.bf16.mxu0 0
    %159 = vmatpush1.bf16.msra.mxu0 0
    %160 = vmatprep.subr.bf16.mxu0 0
    %161 = vmatpush1.bf16.msra.mxu0 0
    %162 = vmatprep.subr.bf16.mxu0 0
    %163 = vmatpush1.bf16.msra.mxu0 0
    %164 = vmatprep.subr.bf16.mxu0 0
    %165 = vmatpush1.bf16.msra.mxu0 0
    %166 = vmatprep.subr.bf16.mxu0 0
    %167 = vmatpush1.bf16.msra.mxu0 0
    %168 = vmatprep.subr.bf16.mxu0 0
    %169 = vmatpush1.bf16.msra.mxu0 0
    %170 = vmatprep.subr.bf16.mxu0 0
    %171 = vmatpush1.bf16.msra.mxu0 0
    %172 = vmatprep.subr.bf16.mxu0 0
    %173 = vmatpush1.bf16.msra.mxu0 0
    %174 = vmatprep.subr.bf16.mxu0 0
    %175 = vmatpush1.bf16.msra.mxu0 0
    %176 = vmatprep.subr.bf16.mxu0 0
    %177 = vmatpush1.bf16.msra.mxu0 0
    %178 = vmatprep.subr.bf16.mxu0 0
    %179 = vmatpush1.bf16.msra.mxu0 0
    %180 = vmatprep.subr.bf16.mxu0 0
    %181 = vmatpush1.bf16.msra.mxu0 0
    %182 = vmatprep.mubr.bf16.mxu0 0
    %183 = vmatmul.mubr.bf16.gmra.mrb[0].mxu0 %v105
    %v184 = vpop.f32.mrb[0].mxu0
    %v185 = vadd.f32 %v74, %v184
    %v186 = vpop.f32.mrb[0].mxu0
    %v187 = vadd.f32 %v78, %v186
    %v188 = vpop.f32.mrb[0].mxu0
    %v189 = vadd.f32 %v74, %v188
    %v190 = vpop.f32.mrb[0].mxu0
    %v191 = vadd.f32 %v78, %v190
    %192 = vdwg.mxu0
    %vm193 = vcmp.gt.f32.partialorder %v142, 0.0
    %vm194 = vcmp.gt.f32.partialorder %v144, 0.0
    %vm195 = vcmp.gt.f32.partialorder %v185, 0.0
    %vm196 = vcmp.gt.f32.partialorder %v187, 0.0
    %vm197 = vcmp.gt.f32.partialorder %v146, 0.0
    %vm198 = vcmp.gt.f32.partialorder %v148, 0.0
    %vm199 = vcmp.gt.f32.partialorder %v189, 0.0
    %vm200 = vcmp.gt.f32.partialorder %v191, 0.0
    %v201 = vmul.f32 %v142, 0.01
    %v202 = vmul.f32 %v144, 0.01
    %v203 = vmul.f32 %v185, 0.01
    %v204 = vmul.f32 %v187, 0.01
    %v205 = vmul.f32 %v146, 0.01
    %v206 = vmul.f32 %v148, 0.01
    %v207 = vmul.f32 %v189, 0.01
    %v208 = vmul.f32 %v191, 0.01
    %v209 = vsel %vm193, %v142, %v201
    %v210 = vsel %vm194, %v144, %v202
    %v211 = vsel %vm195, %v185, %v203
    %v212 = vsel %vm196, %v187, %v204
    %v213 = vsel %vm197, %v146, %v205
    %v214 = vsel %vm198, %v148, %v206
    %v215 = vsel %vm199, %v189, %v207
    %v216 = vsel %vm200, %v191, %v208
    %v217 = vld [vmem:[#allocation2] sm:$0xff]
    %v218 = vld [vmem:[#allocation2 + $0x8] sm:$0xff]
    %v219 = vpack.c.bf16 %v213, %v209
    %v220 = vpack.c.bf16 %v214, %v210
    %v221 = vpack.c.bf16 %v215, %v211
    %v222 = vpack.c.bf16 %v216, %v212
    %v223 = vld [vmem:[#allocation3] sm:$0xf]
    %v224 = vld [vmem:[#allocation3 + $0x4] sm:$0xf]
    %v225 = vld [vmem:[#allocation3 + $0x8] sm:$0xf]
    %v226 = vld [vmem:[#allocation3 + $0xc] sm:$0xf]
    %v227 = vld [vmem:[#allocation3 + $0x10] sm:$0xf]
    %v228 = vld [vmem:[#allocation3 + $0x14] sm:$0xf]
    %v229 = vld [vmem:[#allocation3 + $0x18] sm:$0xf]
    %v230 = vld [vmem:[#allocation3 + $0x1c] sm:$0xf]
    %v231 = vld [vmem:[#allocation3 + $0x20] sm:$0xf]
    %v232 = vld [vmem:[#allocation3 + $0x24] sm:$0xf]
    %v233 = vld [vmem:[#allocation3 + $0x28] sm:$0xf]
    %v234 = vld [vmem:[#allocation3 + $0x2c] sm:$0xf]
    %v235 = vld [vmem:[#allocation3 + $0x30] sm:$0xf]
    %v236 = vld [vmem:[#allocation3 + $0x34] sm:$0xf]
    %v237 = vld [vmem:[#allocation3 + $0x38] sm:$0xf]
    %v238 = vld [vmem:[#allocation3 + $0x3c] sm:$0xf]
    %v239 = vld [vmem:[#allocation3 + $0x40] sm:$0xf]
    %v240 = vld [vmem:[#allocation3 + $0x44] sm:$0xf]
    %v241 = vld [vmem:[#allocation3 + $0x48] sm:$0xf]
    %v242 = vld [vmem:[#allocation3 + $0x4c] sm:$0xf]
    %v243 = vld [vmem:[#allocation3 + $0x50] sm:$0xf]
    %v244 = vld [vmem:[#allocation3 + $0x54] sm:$0xf]
    %v245 = vld [vmem:[#allocation3 + $0x58] sm:$0xf]
    %v246 = vld [vmem:[#allocation3 + $0x5c] sm:$0xf]
    %v247 = vld [vmem:[#allocation3 + $0x60] sm:$0xf]
    %v248 = vld [vmem:[#allocation3 + $0x64] sm:$0xf]
    %v249 = vld [vmem:[#allocation3 + $0x68] sm:$0xf]
    %v250 = vld [vmem:[#allocation3 + $0x6c] sm:$0xf]
    %v251 = vld [vmem:[#allocation3 + $0x70] sm:$0xf]
    %v252 = vld [vmem:[#allocation3 + $0x74] sm:$0xf]
    %v253 = vld [vmem:[#allocation3 + $0x78] sm:$0xf]
    %v254 = vld [vmem:[#allocation3 + $0x7c] sm:$0xf]
    %v255 = vld [vmem:[#allocation3 + $0x80] sm:$0xf]
    %v256 = vld [vmem:[#allocation3 + $0x84] sm:$0xf]
    %v257 = vld [vmem:[#allocation3 + $0x88] sm:$0xf]
    %v258 = vld [vmem:[#allocation3 + $0x8c] sm:$0xf]
    %v259 = vld [vmem:[#allocation3 + $0x90] sm:$0xf]
    %v260 = vld [vmem:[#allocation3 + $0x94] sm:$0xf]
    %v261 = vld [vmem:[#allocation3 + $0x98] sm:$0xf]
    %v262 = vld [vmem:[#allocation3 + $0x9c] sm:$0xf]
    %v263 = vld [vmem:[#allocation3 + $0xa0] sm:$0xf]
    %v264 = vld [vmem:[#allocation3 + $0xa4] sm:$0xf]
    %v265 = vld [vmem:[#allocation3 + $0xa8] sm:$0xf]
    %v266 = vld [vmem:[#allocation3 + $0xac] sm:$0xf]
    %v267 = vld [vmem:[#allocation3 + $0xb0] sm:$0xf]
    %v268 = vld [vmem:[#allocation3 + $0xb4] sm:$0xf]
    %v269 = vld [vmem:[#allocation3 + $0xb8] sm:$0xf]
    %v270 = vld [vmem:[#allocation3 + $0xbc] sm:$0xf]
    %v271 = vld [vmem:[#allocation3 + $0xc0] sm:$0xf]
    %v272 = vld [vmem:[#allocation3 + $0xc4] sm:$0xf]
    %v273 = vld [vmem:[#allocation3 + $0xc8] sm:$0xf]
    %v274 = vld [vmem:[#allocation3 + $0xcc] sm:$0xf]
    %v275 = vld [vmem:[#allocation3 + $0xd0] sm:$0xf]
    %v276 = vld [vmem:[#allocation3 + $0xd4] sm:$0xf]
    %v277 = vld [vmem:[#allocation3 + $0xd8] sm:$0xf]
    %v278 = vld [vmem:[#allocation3 + $0xdc] sm:$0xf]
    %v279 = vld [vmem:[#allocation3 + $0xe0] sm:$0xf]
    %v280 = vld [vmem:[#allocation3 + $0xe4] sm:$0xf]
    %v281 = vld [vmem:[#allocation3 + $0xe8] sm:$0xf]
    %v282 = vld [vmem:[#allocation3 + $0xec] sm:$0xf]
    %v283 = vld [vmem:[#allocation3 + $0xf0] sm:$0xf]
    %v284 = vld [vmem:[#allocation3 + $0xf4] sm:$0xf]
    %v285 = vld [vmem:[#allocation3 + $0xf8] sm:$0xf]
    %v286 = vld [vmem:[#allocation3 + $0xfc] sm:$0xf]
    %v351 = vunpack.c.l.b16 %v223
    %v352 = vunpack.c.l.b16 %v224
    %v353 = vunpack.c.l.b16 %v225
    %v354 = vunpack.c.l.b16 %v226
    %v355 = vunpack.c.l.b16 %v227
    %v356 = vunpack.c.l.b16 %v228
    %v357 = vunpack.c.l.b16 %v229
    %v358 = vunpack.c.l.b16 %v230
    %v359 = vunpack.c.l.b16 %v231
    %v360 = vunpack.c.l.b16 %v232
    %v361 = vunpack.c.l.b16 %v233
    %v362 = vunpack.c.l.b16 %v234
    %v363 = vunpack.c.l.b16 %v235
    %v364 = vunpack.c.l.b16 %v236
    %v365 = vunpack.c.l.b16 %v237
    %v366 = vunpack.c.l.b16 %v238
    %v367 = vunpack.c.l.b16 %v239
    %v368 = vunpack.c.l.b16 %v240
    %v369 = vunpack.c.l.b16 %v241
    %v370 = vunpack.c.l.b16 %v242
    %v371 = vunpack.c.l.b16 %v243
    %v372 = vunpack.c.l.b16 %v244
    %v373 = vunpack.c.l.b16 %v245
    %v374 = vunpack.c.l.b16 %v246
    %v375 = vunpack.c.l.b16 %v247
    %v376 = vunpack.c.l.b16 %v248
    %v377 = vunpack.c.l.b16 %v249
    %v378 = vunpack.c.l.b16 %v250
    %v379 = vunpack.c.l.b16 %v251
    %v380 = vunpack.c.l.b16 %v252
    %v381 = vunpack.c.l.b16 %v253
    %v382 = vunpack.c.l.b16 %v254
    %v383 = vunpack.c.l.b16 %v255
    %v384 = vunpack.c.l.b16 %v256
    %v385 = vunpack.c.l.b16 %v257
    %v386 = vunpack.c.l.b16 %v258
    %v387 = vunpack.c.l.b16 %v259
    %v388 = vunpack.c.l.b16 %v260
    %v389 = vunpack.c.l.b16 %v261
    %v390 = vunpack.c.l.b16 %v262
    %v391 = vunpack.c.l.b16 %v263
    %v392 = vunpack.c.l.b16 %v264
    %v393 = vunpack.c.l.b16 %v265
    %v394 = vunpack.c.l.b16 %v266
    %v395 = vunpack.c.l.b16 %v267
    %v396 = vunpack.c.l.b16 %v268
    %v397 = vunpack.c.l.b16 %v269
    %v398 = vunpack.c.l.b16 %v270
    %v399 = vunpack.c.l.b16 %v271
    %v400 = vunpack.c.l.b16 %v272
    %v401 = vunpack.c.l.b16 %v273
    %v402 = vunpack.c.l.b16 %v274
    %v403 = vunpack.c.l.b16 %v275
    %v404 = vunpack.c.l.b16 %v276
    %v405 = vunpack.c.l.b16 %v277
    %v406 = vunpack.c.l.b16 %v278
    %v407 = vunpack.c.l.b16 %v279
    %v408 = vunpack.c.l.b16 %v280
    %v409 = vunpack.c.l.b16 %v281
    %v410 = vunpack.c.l.b16 %v282
    %v411 = vunpack.c.l.b16 %v283
    %v412 = vunpack.c.l.b16 %v284
    %v413 = vunpack.c.l.b16 %v285
    %v414 = vunpack.c.l.b16 %v286
    %v415 = vpack.c.b16 %v352, %v351
    %v416 = vpack.c.b16 %v354, %v353
    %v417 = vpack.c.b16 %v356, %v355
    %v418 = vpack.c.b16 %v358, %v357
    %v419 = vpack.c.b16 %v360, %v359
    %v420 = vpack.c.b16 %v362, %v361
    %v421 = vpack.c.b16 %v364, %v363
    %v422 = vpack.c.b16 %v366, %v365
    %v423 = vpack.c.b16 %v368, %v367
    %v424 = vpack.c.b16 %v370, %v369
    %v425 = vpack.c.b16 %v372, %v371
    %v426 = vpack.c.b16 %v374, %v373
    %v427 = vpack.c.b16 %v376, %v375
    %v428 = vpack.c.b16 %v378, %v377
    %v429 = vpack.c.b16 %v380, %v379
    %v430 = vpack.c.b16 %v382, %v381
    %v431 = vpack.c.b16 %v384, %v383
    %v432 = vpack.c.b16 %v386, %v385
    %v433 = vpack.c.b16 %v388, %v387
    %v434 = vpack.c.b16 %v390, %v389
    %v435 = vpack.c.b16 %v392, %v391
    %v436 = vpack.c.b16 %v394, %v393
    %v437 = vpack.c.b16 %v396, %v395
    %v438 = vpack.c.b16 %v398, %v397
    %v439 = vpack.c.b16 %v400, %v399
    %v440 = vpack.c.b16 %v402, %v401
    %v441 = vpack.c.b16 %v404, %v403
    %v442 = vpack.c.b16 %v406, %v405
    %v443 = vpack.c.b16 %v408, %v407
    %v444 = vpack.c.b16 %v410, %v409
    %v445 = vpack.c.b16 %v412, %v411
    %v446 = vpack.c.b16 %v414, %v413
    %479 = vmatprep.subr.bf16.mxu0 0
    %480 = vmatpush1.bf16.msra.mxu0 %v415
    %481 = vmatprep.subr.bf16.mxu0 0
    %482 = vmatpush1.bf16.msra.mxu0 %v416
    %483 = vmatprep.subr.bf16.mxu0 0
    %484 = vmatpush1.bf16.msra.mxu0 %v417
    %485 = vmatprep.subr.bf16.mxu0 0
    %486 = vmatpush1.bf16.msra.mxu0 %v418
    %487 = vmatprep.subr.bf16.mxu0 0
    %488 = vmatpush1.bf16.msra.mxu0 %v419
    %489 = vmatprep.subr.bf16.mxu0 0
    %490 = vmatpush1.bf16.msra.mxu0 %v420
    %491 = vmatprep.subr.bf16.mxu0 0
    %492 = vmatpush1.bf16.msra.mxu0 %v421
    %493 = vmatprep.subr.bf16.mxu0 0
    %494 = vmatpush1.bf16.msra.mxu0 %v422
    %495 = vmatprep.subr.bf16.mxu0 0
    %496 = vmatpush1.bf16.msra.mxu0 %v423
    %497 = vmatprep.subr.bf16.mxu0 0
    %498 = vmatpush1.bf16.msra.mxu0 %v424
    %499 = vmatprep.subr.bf16.mxu0 0
    %500 = vmatpush1.bf16.msra.mxu0 %v425
    %501 = vmatprep.subr.bf16.mxu0 0
    %502 = vmatpush1.bf16.msra.mxu0 %v426
    %503 = vmatprep.subr.bf16.mxu0 0
    %504 = vmatpush1.bf16.msra.mxu0 %v427
    %505 = vmatprep.subr.bf16.mxu0 0
    %506 = vmatpush1.bf16.msra.mxu0 %v428
    %507 = vmatprep.subr.bf16.mxu0 0
    %508 = vmatpush1.bf16.msra.mxu0 %v429
    %509 = vmatprep.subr.bf16.mxu0 0
    %510 = vmatpush1.bf16.msra.mxu0 %v430
    %511 = vmatprep.mubr.bf16.mxu0 %v220
    %512 = vmatmul.mubr.bf16.gmra.mrb[0].mxu0 %v219
    %v513 = vpop.f32.mrb[0].mxu0
    %v514 = vadd.f32 0.0, %v513
    %v515 = vpop.f32.mrb[0].mxu0
    %v516 = vpop.f32.mrb[0].mxu0
    %v517 = vadd.f32 0.0, %v516
    %v518 = vpop.f32.mrb[0].mxu0
    %519 = vdwg.mxu0
    %520 = vmatprep.subr.bf16.mxu0 0
    %521 = vmatpush1.bf16.msra.mxu0 %v431
    %522 = vmatprep.subr.bf16.mxu0 0
    %523 = vmatpush1.bf16.msra.mxu0 %v432
    %524 = vmatprep.subr.bf16.mxu0 0
    %525 = vmatpush1.bf16.msra.mxu0 %v433
    %526 = vmatprep.subr.bf16.mxu0 0
    %527 = vmatpush1.bf16.msra.mxu0 %v434
    %528 = vmatprep.subr.bf16.mxu0 0
    %529 = vmatpush1.bf16.msra.mxu0 %v435
    %530 = vmatprep.subr.bf16.mxu0 0
    %531 = vmatpush1.bf16.msra.mxu0 %v436
    %532 = vmatprep.subr.bf16.mxu0 0
    %533 = vmatpush1.bf16.msra.mxu0 %v437
    %534 = vmatprep.subr.bf16.mxu0 0
    %535 = vmatpush1.bf16.msra.mxu0 %v438
    %536 = vmatprep.subr.bf16.mxu0 0
    %537 = vmatpush1.bf16.msra.mxu0 %v439
    %538 = vmatprep.subr.bf16.mxu0 0
    %539 = vmatpush1.bf16.msra.mxu0 %v440
    %540 = vmatprep.subr.bf16.mxu0 0
    %541 = vmatpush1.bf16.msra.mxu0 %v441
    %542 = vmatprep.subr.bf16.mxu0 0
    %543 = vmatpush1.bf16.msra.mxu0 %v442
    %544 = vmatprep.subr.bf16.mxu0 0
    %545 = vmatpush1.bf16.msra.mxu0 %v443
    %546 = vmatprep.subr.bf16.mxu0 0
    %547 = vmatpush1.bf16.msra.mxu0 %v444
    %548 = vmatprep.subr.bf16.mxu0 0
    %549 = vmatpush1.bf16.msra.mxu0 %v445
    %550 = vmatprep.subr.bf16.mxu0 0
    %551 = vmatpush1.bf16.msra.mxu0 %v446
    %552 = vmatprep.mubr.bf16.mxu0 %v222
    %553 = vmatmul.mubr.bf16.gmra.mrb[0].mxu0 %v221
    %v554 = vpop.f32.mrb[0].mxu0
    %v555 = vadd.f32 %v514, %v554
    %v556 = vpop.f32.mrb[0].mxu0
    %v557 = vpop.f32.mrb[0].mxu0
    %v558 = vadd.f32 %v517, %v557
    %v559 = vpop.f32.mrb[0].mxu0
    %560 = vdwg.mxu0
    %v561 = vadd.f32 %v217, %v555
    %v562 = vadd.f32 %v218, %v558
    %563 = vst [vmem:[#allocation2] sm:$0xff] %v561
    %564 = vst [vmem:[#allocation2 + $0x8] sm:$0xff] %v562
    // Predicated region
    $region46: #{tpu_custom_call.1} parent=1 // pred_check
      %p565 = pneg %p48
    $region47: #{tpu_custom_call.1} parent=1 // pred_check_branch
      %567 = sbr.rel (%p565) target = $region49
    $region48: #{tpu_custom_call.1} parent=1 // pred_region
      %v568 = vld [vmem:[#allocation2] sm:$0xff]
      %v569 = vld [vmem:[#allocation2 + $0x8] sm:$0xff]
      %v570 = vld [vmem:[%s4] sm:$0x1]
      %v572 = vlaneseq
      %v573 = vshrl.u32 %v572, 7
      %v574 = vsub.s32 0, %v573
      %v575 = vrot.slane %v570, %v574
      %v577 = vadd.f32 %v568, %v575
      %v578 = vadd.f32 %v569, %v575
      %vm579 = vcmp.gt.f32.partialorder %v577, 0.0
      %vm580 = vcmp.gt.f32.partialorder %v578, 0.0
      %v581 = vmul.f32 %v577, 0.01
      %v582 = vmul.f32 %v578, 0.01
      %v583 = vsel %vm579, %v577, %v581
      %v584 = vsel %vm580, %v578, %v582
      %v585 = vpack.c.bf16 %v584, %v583
      %v586 = vld [vmem:[%s5] sm:$0xf]
      %v587 = vld [vmem:[%s5 + $0x4] sm:$0xf]
      %v588 = vld [vmem:[%s5 + $0x8] sm:$0xf]
      %v589 = vld [vmem:[%s5 + $0xc] sm:$0xf]
      %v590 = vld [vmem:[%s5 + $0x10] sm:$0xf]
      %v591 = vld [vmem:[%s5 + $0x14] sm:$0xf]
      %v592 = vld [vmem:[%s5 + $0x18] sm:$0xf]
      %v593 = vld [vmem:[%s5 + $0x1c] sm:$0xf]
      %v594 = vld [vmem:[%s5 + $0x20] sm:$0xf]
      %v595 = vld [vmem:[%s5 + $0x24] sm:$0xf]
      %v596 = vld [vmem:[%s5 + $0x28] sm:$0xf]
      %v597 = vld [vmem:[%s5 + $0x2c] sm:$0xf]
      %v598 = vld [vmem:[%s5 + $0x30] sm:$0xf]
      %v599 = vld [vmem:[%s5 + $0x34] sm:$0xf]
      %v600 = vld [vmem:[%s5 + $0x38] sm:$0xf]
      %v601 = vld [vmem:[%s5 + $0x3c] sm:$0xf]
      %v602 = vld [vmem:[%s6] sm:$0x1]
      %v604 = vlaneseq
      %v605 = vshrl.u32 %v604, 7
      %v606 = vsub.s32 0, %v605
      %v607 = vrot.slane %v602, %v606
      %v625 = vunpack.c.l.b16 %v586
      %v626 = vunpack.c.l.b16 %v587
      %v627 = vunpack.c.l.b16 %v588
      %v628 = vunpack.c.l.b16 %v589
      %v629 = vunpack.c.l.b16 %v590
      %v630 = vunpack.c.l.b16 %v591
      %v631 = vunpack.c.l.b16 %v592
      %v632 = vunpack.c.l.b16 %v593
      %v633 = vunpack.c.l.b16 %v594
      %v634 = vunpack.c.l.b16 %v595
      %v635 = vunpack.c.l.b16 %v596
      %v636 = vunpack.c.l.b16 %v597
      %v637 = vunpack.c.l.b16 %v598
      %v638 = vunpack.c.l.b16 %v599
      %v639 = vunpack.c.l.b16 %v600
      %v640 = vunpack.c.l.b16 %v601
      %v641 = vpack.c.b16 %v626, %v625
      %v642 = vpack.c.b16 %v628, %v627
      %v643 = vpack.c.b16 %v630, %v629
      %v644 = vpack.c.b16 %v632, %v631
      %v645 = vpack.c.b16 %v634, %v633
      %v646 = vpack.c.b16 %v636, %v635
      %v647 = vpack.c.b16 %v638, %v637
      %v648 = vpack.c.b16 %v640, %v639
      %657 = vmatprep.subr.bf16.mxu0 0
      %658 = vmatpush1.bf16.msra.mxu0 %v641
      %659 = vmatprep.subr.bf16.mxu0 0
      %660 = vmatpush1.bf16.msra.mxu0 %v642
      %661 = vmatprep.subr.bf16.mxu0 0
      %662 = vmatpush1.bf16.msra.mxu0 %v643
      %663 = vmatprep.subr.bf16.mxu0 0
      %664 = vmatpush1.bf16.msra.mxu0 %v644
      %665 = vmatprep.subr.bf16.mxu0 0
      %666 = vmatpush1.bf16.msra.mxu0 %v645
      %667 = vmatprep.subr.bf16.mxu0 0
      %668 = vmatpush1.bf16.msra.mxu0 %v646
      %669 = vmatprep.subr.bf16.mxu0 0
      %670 = vmatpush1.bf16.msra.mxu0 %v647
      %671 = vmatprep.subr.bf16.mxu0 0
      %672 = vmatpush1.bf16.msra.mxu0 %v648
      %673 = vmatprep.subr.bf16.mxu0 0
      %674 = vmatpush1.bf16.msra.mxu0 0
      %675 = vmatprep.subr.bf16.mxu0 0
      %676 = vmatpush1.bf16.msra.mxu0 0
      %677 = vmatprep.subr.bf16.mxu0 0
      %678 = vmatpush1.bf16.msra.mxu0 0
      %679 = vmatprep.subr.bf16.mxu0 0
      %680 = vmatpush1.bf16.msra.mxu0 0
      %681 = vmatprep.subr.bf16.mxu0 0
      %682 = vmatpush1.bf16.msra.mxu0 0
      %683 = vmatprep.subr.bf16.mxu0 0
      %684 = vmatpush1.bf16.msra.mxu0 0
      %685 = vmatprep.subr.bf16.mxu0 0
      %686 = vmatpush1.bf16.msra.mxu0 0
      %687 = vmatprep.subr.bf16.mxu0 0
      %688 = vmatpush1.bf16.msra.mxu0 0
      %689 = vmatprep.mubr.bf16.mxu0 0
      %690 = vmatmul.mubr.bf16.gmra.mrb[0].mxu0 %v585
      %v691 = vpop.f32.mrb[0].mxu0
      %v692 = vadd.f32 %v607, %v691
      %v693 = vpop.f32.mrb[0].mxu0
      %v694 = vpop.f32.mrb[0].mxu0
      %v695 = vadd.f32 %v607, %v694
      %v696 = vpop.f32.mrb[0].mxu0
      %697 = vdwg.mxu0
      %v698 = vpack.c.bf16 %v695, %v692
      %v699 = vld [vmem:[%s7] sm:$0xf]
      %v700 = vld [vmem:[%s7 + $0x4] sm:$0xf]
      %v701 = vld [vmem:[%s7 + $0x8] sm:$0xf]
      %v702 = vld [vmem:[%s7 + $0xc] sm:$0xf]
      %v703 = vld [vmem:[%s8] sm:$0x1]
      %v705 = vlaneseq
      %v706 = vshrl.u32 %v705, 7
      %v707 = vsub.s32 0, %v706
      %v708 = vrot.slane %v703, %v707
      %v714 = vunpack.c.l.b16 %v699
      %v715 = vunpack.c.l.b16 %v700
      %v716 = vunpack.c.l.b16 %v701
      %v717 = vunpack.c.l.b16 %v702
      %v718 = vpack.c.b16 %v715, %v714
      %v719 = vpack.c.b16 %v717, %v716
      %vm722 = vcmask 261120
      %v724 = vsel %vm722, %v698, 0
      %726 = vmatprep.subr.bf16.mxu0 0
      %727 = vmatpush1.bf16.msra.mxu0 %v718
      %728 = vmatprep.subr.bf16.mxu0 0
      %729 = vmatpush1.bf16.msra.mxu0 %v719
      %730 = vmatprep.subr.bf16.mxu0 0
      %731 = vmatpush1.bf16.msra.mxu0 0
      %732 = vmatprep.subr.bf16.mxu0 0
      %733 = vmatpush1.bf16.msra.mxu0 0
      %734 = vmatprep.subr.bf16.mxu0 0
      %735 = vmatpush1.bf16.msra.mxu0 0
      %736 = vmatprep.subr.bf16.mxu0 0
      %737 = vmatpush1.bf16.msra.mxu0 0
      %738 = vmatprep.subr.bf16.mxu0 0
      %739 = vmatpush1.bf16.msra.mxu0 0
      %740 = vmatprep.subr.bf16.mxu0 0
      %741 = vmatpush1.bf16.msra.mxu0 0
      %742 = vmatprep.subr.bf16.mxu0 0
      %743 = vmatpush1.bf16.msra.mxu0 0
      %744 = vmatprep.subr.bf16.mxu0 0
      %745 = vmatpush1.bf16.msra.mxu0 0
      %746 = vmatprep.subr.bf16.mxu0 0
      %747 = vmatpush1.bf16.msra.mxu0 0
      %748 = vmatprep.subr.bf16.mxu0 0
      %749 = vmatpush1.bf16.msra.mxu0 0
      %750 = vmatprep.subr.bf16.mxu0 0
      %751 = vmatpush1.bf16.msra.mxu0 0
      %752 = vmatprep.subr.bf16.mxu0 0
      %753 = vmatpush1.bf16.msra.mxu0 0
      %754 = vmatprep.subr.bf16.mxu0 0
      %755 = vmatpush1.bf16.msra.mxu0 0
      %756 = vmatprep.subr.bf16.mxu0 0
      %757 = vmatpush1.bf16.msra.mxu0 0
      %758 = vmatprep.mubr.bf16.mxu0 0
      %759 = vmatmul.mubr.bf16.gmra.mrb[0].mxu0 %v724
      %v760 = vpop.f32.mrb[0].mxu0
      %v761 = vadd.f32 %v708, %v760
      %v762 = vpop.f32.mrb[0].mxu0
      %v763 = vpop.f32.mrb[0].mxu0
      %v764 = vadd.f32 %v708, %v763
      %v765 = vpop.f32.mrb[0].mxu0
      %766 = vdwg.mxu0
      %v767 = vlaneseq
      %v768 = vand.u32 %v767, 127
      %vm769 = vcmp.lt.s32.totalorder %v768, 8
      %v770 = vsel %vm769, %v761, -inf
      %v771 = vsel %vm769, %v764, -inf
      %772 = vmax.xlane.f32.xlu0 %v770
      %v773 = vpop.xlane.xlu0 %772
      %774 = vmax.xlane.f32.xlu0 %v771
      %v775 = vpop.xlane.xlu0 %774
      %v776 = vsub.f32 %v770, %v773
      %v777 = vsub.f32 %v771, %v775
      %v778 = vmul.f32 %v776, 1.442695
      %v779 = vpow.pop %v778
      %v780 = vmul.f32 %v777, 1.442695
      %v781 = vpow.pop %v780
      %782 = vadd.xlane.f32.xlu0 %v779
      %v783 = vpop.xlane.xlu0 %782
      %784 = vadd.xlane.f32.xlu0 %v781
      %v785 = vpop.xlane.xlu0 %784
      %v786 = vrcp.pop %v783
      %v787 = vmul.f32 %v779, %v786
      %v788 = vrcp.pop %v785
      %v789 = vmul.f32 %v781, %v788
      %v790 = vsel %vm769, %v787, %v761
      %v791 = vsel %vm769, %v789, %v764
      %792 = vst [vmem:[#allocation6] sm:$0xff] %v790
      %793 = vst [vmem:[#allocation6 + $0x8] sm:$0xff] %v791
    $region49: #{tpu_custom_call.1} parent=1 // pred_fallthru
      _
    // Predicated region
    $region50: #{tpu_custom_call.1} parent=1 // pred_check
      _
    $region51: #{tpu_custom_call.1} parent=1 // pred_check_branch
      %795 = sbr.rel (0) target = $region53
    $region52: #{tpu_custom_call.1} parent=1 // pred_region
      %s797 = ssub.s32 256, 256
      %798 = vsyncadd [#allocation5], %s797
      %s799 = sshll.u32 [#allocation6], 4
      %s800 = int_to_ptr.vmem [resolvable:$true] %s799
      %805 = dma.vmem_to_hbm [thread:$0]  %s800, 256, %s9, [#allocation5], 128, 128, 8
    $region53: #{tpu_custom_call.1} parent=1 // pred_fallthru
      _
    // Predicated region
    $region54: #{tpu_custom_call.1} parent=1 // pred_check
      _
    $region55: #{tpu_custom_call.1} parent=1 // pred_check_branch
      %807 = sbr.rel (0) target = $region57
    $region56: #{tpu_custom_call.1} parent=1 // pred_region
      %808 = dma.done [#allocation5], 256
    $region57: #{tpu_custom_call.1} parent=1 // pred_fallthru
      _
    %809 = vsyncpa [#allocation4], 1
    %810 = vsyncpa [#allocation5], 1

</llo_original>
